<compile_context>
chip_gen: v5e
topology: v5e:2x2
jax: 0.10.0
libtpu: 0.0.40
codegen_flags: <defaults>
</compile_context>

<pallas_src>
import jax
import jax.numpy as jnp
from jax import lax
from jax.experimental import pallas as pl
from jax.experimental.pallas import tpu as pltpu


# ----------------------------------------------------------------------------
# Fused Pallas kernel (one grid step per batch element)
# ----------------------------------------------------------------------------
def _attention_block_kernel(x1_ref, x2_ref, up_ref,
                            wg_ref, bg_ref, wup_ref, bup_ref,
                            wl_ref, bl_ref, wpsi_ref, bpsi_ref, o_ref):
    # x1_ref : (1, Cg,  H*W)      x2_ref : (1, Cl, H2*W2)
    # up_ref : (H2*W2, H*W)       = kron(A_rows, A_cols)^T  (bilinear interp weights)
    # w*_ref : (Co, Cin)          b*_ref : (Co, 1)     (conv bias + BN folded)
    # wpsi   : (Co, 1)            bpsi   : (1, 1)
    # o_ref  : (1, Co, H*W)
    x1 = x1_ref[0]                                  # (Cg, HW)
    x2 = x2_ref[0]                                  # (Cl, H2*W2)

    # Bilinear 2x upsample (align_corners=True) as a single MXU matmul.
    up = jnp.dot(x2, up_ref[...], preferred_element_type=jnp.float32)    # (Cl, HW)

    # up_conv tail: 1x1 conv (+ folded BN) + ReLU
    x2u = jnp.maximum(
        jnp.dot(wup_ref[...], up, preferred_element_type=jnp.float32) + bup_ref[...], 0.0)
    # conv_l: 1x1 conv (+ folded BN) + ReLU
    x2l = jnp.maximum(
        jnp.dot(wl_ref[...], x2u, preferred_element_type=jnp.float32) + bl_ref[...], 0.0)
    # conv_g: 1x1 conv (+ folded BN) + ReLU
    x1g = jnp.maximum(
        jnp.dot(wg_ref[...], x1, preferred_element_type=jnp.float32) + bg_ref[...], 0.0)

    # relu(x1g + x2l) == x1g + x2l since both addends are ReLU outputs (>= 0).
    net = x1g + x2l                                 # (Co, HW)

    # psi: 1x1 conv to one channel (+ folded BN) + sigmoid. Co->1 contraction is a
    # sublane (XLU) reduction; the divide goes to the EUP via approximate reciprocal.
    psi_pre = jnp.sum(net * wpsi_ref[...], axis=0, keepdims=True) + bpsi_ref[...]
    psi = pl.reciprocal(1.0 + jnp.exp(-psi_pre), approx=True)            # (1, HW)

    o_ref[0] = (net * psi).astype(o_ref.dtype)      # lane-dense store (HW = 256 lanes)


# ----------------------------------------------------------------------------
# Wrapper
# ----------------------------------------------------------------------------
def _interp_matrix(n_out, n_in):
    """Row-interpolation matrix for bilinear resize with align_corners=True."""
    if n_in == 1:
        return jnp.ones((n_out, 1), jnp.float32)
    src = jnp.arange(n_out, dtype=jnp.float32) * (n_in - 1) / (n_out - 1)
    i0 = jnp.clip(jnp.floor(src).astype(jnp.int32), 0, n_in - 2)
    frac = src - i0.astype(jnp.float32)
    rows = jnp.arange(n_out)
    m = jnp.zeros((n_out, n_in), jnp.float32)
    m = m.at[rows, i0].set(1.0 - frac)
    m = m.at[rows, i0 + 1].add(frac)
    return m


def _fold_conv_bn(p, eps=1e-5):
    """Fold conv bias + eval-mode BatchNorm into an effective (w, b)."""
    scale = p["gamma"] / jnp.sqrt(p["var"] + eps)
    shift = p["beta"] - p["mean"] * scale
    w_eff = p["w"] * scale[None, :]                 # (cin, cout)
    b_eff = p["b"] * scale + shift                  # (cout,)
    return w_eff, b_eff


def attention_block_forward(x1_nchw, x2_nchw, params):
    n, cg, H, W = x1_nchw.shape
    _, cl, H2, W2 = x2_nchw.shape
    cout = params["g"]["w"].shape[1]
    hw, hw2 = H * W, H2 * W2

    # NCHW -> (N, C, H*W): free reshapes, keeps spatial on the 128-lane axis.
    x1 = x1_nchw.reshape(n, cg, hw)
    x2 = x2_nchw.reshape(n, cl, hw2)

    # Precomputed bilinear-upsample operator (transposed): (H2*W2, H*W).
    up_t = jnp.kron(_interp_matrix(H, H2), _interp_matrix(W, W2)).T

    wg, bg = _fold_conv_bn(params["g"])
    wup, bup = _fold_conv_bn(params["up"])
    wl, bl = _fold_conv_bn(params["l"])
    wpsi, bpsi = _fold_conv_bn(params["psi"])       # (cout, 1), (1,)

    out = pl.pallas_call(
        _attention_block_kernel,
        out_shape=jax.ShapeDtypeStruct((n, cout, hw), jnp.float32),
        grid=(n,),
        in_specs=[
            pl.BlockSpec((1, cg, hw), lambda i: (i, 0, 0)),
            pl.BlockSpec((1, cl, hw2), lambda i: (i, 0, 0)),
            pl.BlockSpec((hw2, hw), lambda i: (0, 0)),
            pl.BlockSpec((cout, cg), lambda i: (0, 0)),
            pl.BlockSpec((cout, 1), lambda i: (0, 0)),
            pl.BlockSpec((cout, cl), lambda i: (0, 0)),
            pl.BlockSpec((cout, 1), lambda i: (0, 0)),
            pl.BlockSpec((cout, cout), lambda i: (0, 0)),
            pl.BlockSpec((cout, 1), lambda i: (0, 0)),
            pl.BlockSpec((cout, 1), lambda i: (0, 0)),
            pl.BlockSpec((1, 1), lambda i: (0, 0)),
        ],
        out_specs=pl.BlockSpec((1, cout, hw), lambda i: (i, 0, 0)),
        compiler_params=pltpu.CompilerParams(dimension_semantics=("parallel",)),
    )(x1, x2, up_t,
      wg.T, bg.reshape(cout, 1),
      wup.T, bup.reshape(cout, 1),
      wl.T, bl.reshape(cout, 1),
      wpsi.reshape(cout, 1), bpsi.reshape(1, 1))

    return out.reshape(n, cout, H, W)               # already NCHW


# ----------------------------------------------------------------------------
# Pure-JAX reference (mirrors the PyTorch module op-for-op, unfolded BN)
# ----------------------------------------------------------------------------
def _ref_conv1x1_bn(x_nchw, p, eps=1e-5):
    y = jnp.einsum("nchw,cd->ndhw", x_nchw, p["w"], precision=lax.Precision.HIGHEST)
    y = y + p["b"][None, :, None, None]
    scale = p["gamma"] / jnp.sqrt(p["var"] + eps)
    shift = p["beta"] - p["mean"] * scale
    return y * scale[None, :, None, None] + shift[None, :, None, None]


def attention_block_reference(x1, x2, params):
    _, _, h2, w2 = x2.shape
    _, _, H, W = x1.shape
    A = _interp_matrix(H, h2)
    B = _interp_matrix(W, w2)
    x2u = jnp.einsum("ip,jq,ncpq->ncij", A, B, x2, precision=lax.Precision.HIGHEST)
    x2u = jnp.maximum(_ref_conv1x1_bn(x2u, params["up"]), 0.0)   # up_conv
    x2l = jnp.maximum(_ref_conv1x1_bn(x2u, params["l"]), 0.0)    # conv_l
    x1g = jnp.maximum(_ref_conv1x1_bn(x1, params["g"]), 0.0)     # conv_g
    net = jnp.maximum(x1g + x2l, 0.0)
    psi = jax.nn.sigmoid(_ref_conv1x1_bn(net, params["psi"]))
    return net * psi


# ----------------------------------------------------------------------------
# Deterministic parameter initialization
# ----------------------------------------------------------------------------
def init_params(key, in_ch_g, in_ch_l, out_ch):
    def conv_bn(k, cin, co):
        ks = jax.random.split(k, 6)
        return {
            "w": jax.random.normal(ks[0], (cin, co), jnp.float32) / jnp.sqrt(cin),
            "b": 0.05 * jax.random.normal(ks[1], (co,), jnp.float32),
            "gamma": 1.0 + 0.1 * jax.random.normal(ks[2], (co,), jnp.float32),
            "beta": 0.1 * jax.random.normal(ks[3], (co,), jnp.float32),
            "mean": 0.1 * jax.random.normal(ks[4], (co,), jnp.float32),
            "var": jax.random.uniform(ks[5], (co,), jnp.float32, 0.5, 1.5),
        }
    kg, kup, kl, kpsi = jax.random.split(key, 4)
    return {
        "g": conv_bn(kg, in_ch_g, out_ch),
        "up": conv_bn(kup, in_ch_l, out_ch),
        "l": conv_bn(kl, out_ch, out_ch),
        "psi": conv_bn(kpsi, out_ch, 1),
    }


# ----------------------------------------------------------------------------
if __name__ == "__main__":
    N, IN_CH_G, IN_CH_L, OUT_CH, H, W = 2, 4, 8, 16, 16, 16

    key = jax.random.PRNGKey(0)
    k1, k2, kp = jax.random.split(key, 3)
    x1 = jax.random.normal(k1, (N, IN_CH_G, H, W), jnp.float32)            # skip feature (NCHW)
    x2 = jax.random.normal(k2, (N, IN_CH_L, H // 2, W // 2), jnp.float32)  # coarse feature (NCHW)
    params = init_params(kp, IN_CH_G, IN_CH_L, OUT_CH)

    out = jax.jit(attention_block_forward)(x1, x2, params)
    out = jax.block_until_ready(out)

    ref = attention_block_reference(x1, x2, params)
    assert out.shape == (N, OUT_CH, H, W), out.shape
    # Tolerance covers the MXU's default (bf16-pass) f32 matmul and the approximate
    # EUP reciprocal vs the HIGHEST-precision pure-JAX reference.
    max_err = float(jnp.max(jnp.abs(out - ref)))
    assert jnp.allclose(out, ref, rtol=2e-2, atol=2e-2), max_err

    print("KERNEL_OK")
</pallas_src>

<mosaic_0001>
module attributes {stable_mosaic.version = 11 : i64} {
  func.func @_attention_block_kernel(%arg0: i32, %arg1: memref<1x4x256xf32, #tpu.memory_space<vmem>>, %arg2: memref<1x8x64xf32, #tpu.memory_space<vmem>>, %arg3: memref<64x256xf32, #tpu.memory_space<vmem>>, %arg4: memref<16x4xf32, #tpu.memory_space<vmem>>, %arg5: memref<16x1xf32, #tpu.memory_space<vmem>>, %arg6: memref<16x8xf32, #tpu.memory_space<vmem>>, %arg7: memref<16x1xf32, #tpu.memory_space<vmem>>, %arg8: memref<16x16xf32, #tpu.memory_space<vmem>>, %arg9: memref<16x1xf32, #tpu.memory_space<vmem>>, %arg10: memref<16x1xf32, #tpu.memory_space<vmem>>, %arg11: memref<1x1xf32, #tpu.memory_space<vmem>>, %arg12: memref<1x16x256xf32, #tpu.memory_space<vmem>>) attributes {dimension_semantics = [#tpu.dimension_semantics<parallel>], iteration_bounds = array<i64: 2>, scalar_prefetch = 0 : i64, scratch_operands = 0 : i64, tpu.core_type = #tpu.core_type<tc>, window_params = [{transform_indices = @transform_0, window_bounds = array<i64: 1, 4, 256>}, {transform_indices = @transform_1, window_bounds = array<i64: 1, 8, 64>}, {pipeline_mode = #tpu.pipeline_mode<synchronous>, transform_indices = @transform_2, window_bounds = array<i64: 64, 256>}, {pipeline_mode = #tpu.pipeline_mode<synchronous>, transform_indices = @transform_3, window_bounds = array<i64: 16, 4>}, {pipeline_mode = #tpu.pipeline_mode<synchronous>, transform_indices = @transform_4, window_bounds = array<i64: 16, 1>}, {pipeline_mode = #tpu.pipeline_mode<synchronous>, transform_indices = @transform_5, window_bounds = array<i64: 16, 8>}, {pipeline_mode = #tpu.pipeline_mode<synchronous>, transform_indices = @transform_6, window_bounds = array<i64: 16, 1>}, {pipeline_mode = #tpu.pipeline_mode<synchronous>, transform_indices = @transform_7, window_bounds = array<i64: 16, 16>}, {pipeline_mode = #tpu.pipeline_mode<synchronous>, transform_indices = @transform_8, window_bounds = array<i64: 16, 1>}, {pipeline_mode = #tpu.pipeline_mode<synchronous>, transform_indices = @transform_9, window_bounds = array<i64: 16, 1>}, {pipeline_mode = #tpu.pipeline_mode<synchronous>, transform_indices = @transform_10, window_bounds = array<i64: 1, 1>}, {transform_indices = @transform_11, window_bounds = array<i64: 1, 16, 256>}]} {
    %c0 = arith.constant 0 : index
    %c0_0 = arith.constant 0 : index
    %c0_1 = arith.constant 0 : index
    %0 = vector.load %arg1[%c0, %c0_0, %c0_1] : memref<1x4x256xf32, #tpu.memory_space<vmem>>, vector<1x4x256xf32>
    %1 = vector.shape_cast %0 : vector<1x4x256xf32> to vector<4x256xf32>
    %c0_2 = arith.constant 0 : index
    %c0_3 = arith.constant 0 : index
    %c0_4 = arith.constant 0 : index
    %2 = vector.load %arg2[%c0_2, %c0_3, %c0_4] : memref<1x8x64xf32, #tpu.memory_space<vmem>>, vector<1x8x64xf32>
    %3 = vector.shape_cast %2 : vector<1x8x64xf32> to vector<8x64xf32>
    %c0_5 = arith.constant 0 : index
    %c0_6 = arith.constant 0 : index
    %4 = vector.load %arg3[%c0_5, %c0_6] : memref<64x256xf32, #tpu.memory_space<vmem>>, vector<64x256xf32>
    %cst = arith.constant dense<0.000000e+00> : vector<8x256xf32>
    %5 = tpu.matmul %3, %4, %cst {dimension_numbers = #tpu.dot_dimension_numbers<[1], [0], [0], [1], [0, 0, 1, 1], [], []>} : vector<8x64xf32>, vector<64x256xf32>, vector<8x256xf32> -> vector<8x256xf32>
    %c0_7 = arith.constant 0 : index
    %c0_8 = arith.constant 0 : index
    %6 = vector.load %arg6[%c0_7, %c0_8] : memref<16x8xf32, #tpu.memory_space<vmem>>, vector<16x8xf32>
    %cst_9 = arith.constant dense<0.000000e+00> : vector<16x256xf32>
    %7 = tpu.matmul %6, %5, %cst_9 {dimension_numbers = #tpu.dot_dimension_numbers<[1], [0], [0], [1], [0, 0, 1, 1], [], []>} : vector<16x8xf32>, vector<8x256xf32>, vector<16x256xf32> -> vector<16x256xf32>
    %c0_10 = arith.constant 0 : index
    %c0_11 = arith.constant 0 : index
    %8 = vector.load %arg7[%c0_10, %c0_11] : memref<16x1xf32, #tpu.memory_space<vmem>>, vector<16x1xf32>
    %9 = vector.broadcast %8 : vector<16x1xf32> to vector<16x256xf32>
    %10 = arith.addf %7, %9 : vector<16x256xf32>
    %cst_12 = arith.constant 0.000000e+00 : f32
    %11 = vector.broadcast %cst_12 : f32 to vector<16x256xf32>
    %12 = arith.maximumf %10, %11 : vector<16x256xf32>
    %c0_13 = arith.constant 0 : index
    %c0_14 = arith.constant 0 : index
    %13 = vector.load %arg8[%c0_13, %c0_14] : memref<16x16xf32, #tpu.memory_space<vmem>>, vector<16x16xf32>
    %cst_15 = arith.constant dense<0.000000e+00> : vector<16x256xf32>
    %14 = tpu.matmul %13, %12, %cst_15 {dimension_numbers = #tpu.dot_dimension_numbers<[1], [0], [0], [1], [0, 0, 1, 1], [], []>} : vector<16x16xf32>, vector<16x256xf32>, vector<16x256xf32> -> vector<16x256xf32>
    %c0_16 = arith.constant 0 : index
    %c0_17 = arith.constant 0 : index
    %15 = vector.load %arg9[%c0_16, %c0_17] : memref<16x1xf32, #tpu.memory_space<vmem>>, vector<16x1xf32>
    %16 = vector.broadcast %15 : vector<16x1xf32> to vector<16x256xf32>
    %17 = arith.addf %14, %16 : vector<16x256xf32>
    %cst_18 = arith.constant 0.000000e+00 : f32
    %18 = vector.broadcast %cst_18 : f32 to vector<16x256xf32>
    %19 = arith.maximumf %17, %18 : vector<16x256xf32>
    %c0_19 = arith.constant 0 : index
    %c0_20 = arith.constant 0 : index
    %20 = vector.load %arg4[%c0_19, %c0_20] : memref<16x4xf32, #tpu.memory_space<vmem>>, vector<16x4xf32>
    %cst_21 = arith.constant dense<0.000000e+00> : vector<16x256xf32>
    %21 = tpu.matmul %20, %1, %cst_21 {dimension_numbers = #tpu.dot_dimension_numbers<[1], [0], [0], [1], [0, 0, 1, 1], [], []>} : vector<16x4xf32>, vector<4x256xf32>, vector<16x256xf32> -> vector<16x256xf32>
    %c0_22 = arith.constant 0 : index
    %c0_23 = arith.constant 0 : index
    %22 = vector.load %arg5[%c0_22, %c0_23] : memref<16x1xf32, #tpu.memory_space<vmem>>, vector<16x1xf32>
    %23 = vector.broadcast %22 : vector<16x1xf32> to vector<16x256xf32>
    %24 = arith.addf %21, %23 : vector<16x256xf32>
    %cst_24 = arith.constant 0.000000e+00 : f32
    %25 = vector.broadcast %cst_24 : f32 to vector<16x256xf32>
    %26 = arith.maximumf %24, %25 : vector<16x256xf32>
    %27 = arith.addf %26, %19 : vector<16x256xf32>
    %c0_25 = arith.constant 0 : index
    %c0_26 = arith.constant 0 : index
    %28 = vector.load %arg10[%c0_25, %c0_26] : memref<16x1xf32, #tpu.memory_space<vmem>>, vector<16x1xf32>
    %29 = vector.broadcast %28 : vector<16x1xf32> to vector<16x256xf32>
    %30 = arith.mulf %27, %29 : vector<16x256xf32>
    %cst_27 = arith.constant dense<0.000000e+00> : vector<256xf32>
    %31 = vector.multi_reduction <add>, %30, %cst_27 [0] : vector<16x256xf32> to vector<256xf32>
    %32 = vector.shape_cast %31 : vector<256xf32> to vector<1x256xf32>
    %c0_28 = arith.constant 0 : index
    %c0_29 = arith.constant 0 : index
    %33 = vector.load %arg11[%c0_28, %c0_29] : memref<1x1xf32, #tpu.memory_space<vmem>>, vector<1x1xf32>
    %34 = vector.broadcast %33 : vector<1x1xf32> to vector<1x256xf32>
    %35 = arith.addf %32, %34 : vector<1x256xf32>
    %cst_30 = arith.constant 0.000000e+00 : f32
    %36 = vector.broadcast %cst_30 : f32 to vector<1x256xf32>
    %37 = arith.subf %36, %35 : vector<1x256xf32>
    %38 = math.exp %37 : vector<1x256xf32>
    %cst_31 = arith.constant 1.000000e+00 : f32
    %39 = vector.broadcast %cst_31 : f32 to vector<1x256xf32>
    %40 = arith.addf %39, %38 : vector<1x256xf32>
    %41 = tpu.reciprocal %40 {approx = true} : vector<1x256xf32> -> vector<1x256xf32>
    %42 = vector.broadcast %41 : vector<1x256xf32> to vector<16x256xf32>
    %43 = arith.mulf %27, %42 : vector<16x256xf32>
    %c0_32 = arith.constant 0 : index
    %c0_33 = arith.constant 0 : index
    %c0_34 = arith.constant 0 : index
    %44 = vector.load %arg12[%c0_32, %c0_33, %c0_34] : memref<1x16x256xf32, #tpu.memory_space<vmem>>, vector<1x16x256xf32>
    %45 = vector.shape_cast %44 : vector<1x16x256xf32> to vector<16x256xf32>
    %46 = vector.shape_cast %43 : vector<16x256xf32> to vector<1x16x256xf32>
    tpu.vector_store %arg12[%c0_32, %c0_33, %c0_34], %46 {strides = array<i32>} : memref<1x16x256xf32, #tpu.memory_space<vmem>>, vector<1x16x256xf32>,
    return
  }
  func.func @transform_0(%arg0: i32) -> (i32, i32, i32) {
    %c0_i32 = arith.constant 0 : i32
    %c0_i32_0 = arith.constant 0 : i32
    %c0_i32_1 = arith.constant 0 : i32
    return %arg0, %c0_i32, %c0_i32_0 : i32, i32, i32
  }
  func.func @transform_1(%arg0: i32) -> (i32, i32, i32) {
    %c0_i32 = arith.constant 0 : i32
    %c0_i32_0 = arith.constant 0 : i32
    %c0_i32_1 = arith.constant 0 : i32
    return %arg0, %c0_i32, %c0_i32_0 : i32, i32, i32
  }
  func.func @transform_2(%arg0: i32) -> (i32, i32) {
    %c0_i32 = arith.constant 0 : i32
    %c0_i32_0 = arith.constant 0 : i32
    %c0_i32_1 = arith.constant 0 : i32
    return %c0_i32, %c0_i32_0 : i32, i32
  }
  func.func @transform_3(%arg0: i32) -> (i32, i32) {
    %c0_i32 = arith.constant 0 : i32
    %c0_i32_0 = arith.constant 0 : i32
    %c0_i32_1 = arith.constant 0 : i32
    return %c0_i32, %c0_i32_0 : i32, i32
  }
  func.func @transform_4(%arg0: i32) -> (i32, i32) {
    %c0_i32 = arith.constant 0 : i32
    %c0_i32_0 = arith.constant 0 : i32
    %c0_i32_1 = arith.constant 0 : i32
    return %c0_i32, %c0_i32_0 : i32, i32
  }
  func.func @transform_5(%arg0: i32) -> (i32, i32) {
    %c0_i32 = arith.constant 0 : i32
    %c0_i32_0 = arith.constant 0 : i32
    %c0_i32_1 = arith.constant 0 : i32
    return %c0_i32, %c0_i32_0 : i32, i32
  }
  func.func @transform_6(%arg0: i32) -> (i32, i32) {
    %c0_i32 = arith.constant 0 : i32
    %c0_i32_0 = arith.constant 0 : i32
    %c0_i32_1 = arith.constant 0 : i32
    return %c0_i32, %c0_i32_0 : i32, i32
  }
  func.func @transform_7(%arg0: i32) -> (i32, i32) {
    %c0_i32 = arith.constant 0 : i32
    %c0_i32_0 = arith.constant 0 : i32
    %c0_i32_1 = arith.constant 0 : i32
    return %c0_i32, %c0_i32_0 : i32, i32
  }
  func.func @transform_8(%arg0: i32) -> (i32, i32) {
    %c0_i32 = arith.constant 0 : i32
    %c0_i32_0 = arith.constant 0 : i32
    %c0_i32_1 = arith.constant 0 : i32
    return %c0_i32, %c0_i32_0 : i32, i32
  }
  func.func @transform_9(%arg0: i32) -> (i32, i32) {
    %c0_i32 = arith.constant 0 : i32
    %c0_i32_0 = arith.constant 0 : i32
    %c0_i32_1 = arith.constant 0 : i32
    return %c0_i32, %c0_i32_0 : i32, i32
  }
  func.func @transform_10(%arg0: i32) -> (i32, i32) {
    %c0_i32 = arith.constant 0 : i32
    %c0_i32_0 = arith.constant 0 : i32
    %c0_i32_1 = arith.constant 0 : i32
    return %c0_i32, %c0_i32_0 : i32, i32
  }
  func.func @transform_11(%arg0: i32) -> (i32, i32, i32) {
    %c0_i32 = arith.constant 0 : i32
    %c0_i32_0 = arith.constant 0 : i32
    %c0_i32_1 = arith.constant 0 : i32
    return %arg0, %c0_i32, %c0_i32_0 : i32, i32, i32
  }
}

</mosaic_0001>

<llo_original>
// kernel: attention_block_forward.1
$region0: #{attention_block_forward.1}
  #allocation0 [shape = 'u32[]', space=smem, size = 0x4, offset = 0x4, fixed_abs, tag = 'smem constant byte address 0x4 - core index']
  #allocation1 [shape = 'u32[72,128]{1,0:T(1,128)}', space=vmem, size = 0x9000, scoped, tag = 'internal scratch']
  #allocation2 [shape = 'f32[1,1]{1,0:T(1,128)S(1)}', space=vmem, size = 0x200, scoped, tag = 'scoped memory for attention_block_forward.1']
  %s0 = inlined_call_operand.vmem [shape: f32[2,4,256], index: 0, kind: input, shape index: {}]
  %s1 = inlined_call_operand.vmem [shape: f32[2,8,64], index: 1, kind: input, shape index: {}]
  %s2 = inlined_call_operand.vmem [shape: f32[64,256], index: 2, kind: input, shape index: {}]
  %s3 = inlined_call_operand.vmem [shape: f32[16,4], index: 3, kind: input, shape index: {}]
  %s4 = inlined_call_operand.vmem [shape: f32[16,1], index: 4, kind: input, shape index: {}]
  %s5 = inlined_call_operand.vmem [shape: f32[16,8], index: 5, kind: input, shape index: {}]
  %s6 = inlined_call_operand.vmem [shape: f32[16,1], index: 6, kind: input, shape index: {}]
  %s7 = inlined_call_operand.vmem [shape: f32[16,16], index: 7, kind: input, shape index: {}]
  %s8 = inlined_call_operand.vmem [shape: f32[16,1], index: 8, kind: input, shape index: {}]
  %s9 = inlined_call_operand.vmem [shape: f32[16,1], index: 9, kind: input, shape index: {}]
  %s10 = inlined_call_operand.<no memory space> [shape: f32[1,1], index: 10, kind: input, shape index: {}]
  %s11 = inlined_call_operand.vmem [shape: f32[2,16,256], index: 11, kind: output, shape index: {}]
  %s12 = sld [smem:[#allocation0]]
  $region77: #{attention_block_forward.1} parent=0
    _
  %s14 = ssub.s32 1, %s12
  %s15 = scalar_select 0, %s14, %s12
  %v16 = vstv %s10
  %17 = vst [vmem:[#allocation2] sm:$0x1] %v16
  loop: start=0, step=1, limit=4
  $region2: #{attention_block_forward.1} parent=0 // loop_pre_header
    _
  $region3: #{attention_block_forward.1} parent=0 // loop_header
    %s19 = sphi 0, %s23
    %p20 = scmp.ge.s32.totalorder %s19, 4
    %s29 = sphi 0, %s31
    %s32 = sphi 0, %s29
    %s33 = sphi 0, %s32
    %s49 = sphi 0, %s33
    %s55 = sphi 0, %s57
    %s58 = sphi 0, %s55
    %s59 = sphi 0, %s58
    %s75 = sphi 0, %s59
    %s79 = sphi 0, %s79
    %s81 = sphi 0, %s79
    %s82 = sphi 0, %s81
    %s96 = sphi 0, %s82
    %s100 = sphi 0, %s100
    %s102 = sphi 0, %s100
    %s103 = sphi 0, %s102
    %s117 = sphi 0, %s103
    %s121 = sphi 0, %s121
    %s123 = sphi 0, %s121
    %s124 = sphi 0, %s123
    %s138 = sphi 0, %s124
    %s142 = sphi 0, %s142
    %s144 = sphi 0, %s142
    %s145 = sphi 0, %s144
    %s159 = sphi 0, %s145
    %s163 = sphi 0, %s163
    %s165 = sphi 0, %s163
    %s166 = sphi 0, %s165
    %s180 = sphi 0, %s166
    %s184 = sphi 0, %s184
    %s186 = sphi 0, %s184
    %s187 = sphi 0, %s186
    %s201 = sphi 0, %s187
    %s205 = sphi 0, %s205
    %s207 = sphi 0, %s205
    %s208 = sphi 0, %s207
    %s222 = sphi 0, %s208
    %s226 = sphi 0, %s226
    %s228 = sphi 0, %s226
    %s229 = sphi 0, %s228
    %s243 = sphi 0, %s229
    %s247 = sphi 0, %s247
    %s249 = sphi 0, %s247
    %s250 = sphi 0, %s249
    %s264 = sphi 0, %s250
    %s270 = sphi 0, %s272
    %s273 = sphi 0, %s270
    %s274 = sphi 0, %s273
    %s290 = sphi 0, %s274
  $region4: #{attention_block_forward.1} parent=0 // loop_header_branch
    %22 = sbr.rel (%p20) target = $region8
  $region5: #{attention_block_forward.1} parent=0 // loop_body
    %s24 = ssub.s32 %s19, 1
    %s25 = ssub.s32 %s19, 2
    %s26 = sadd.s32 %s19, 1
    %s27 = ssub.s32 %s19, %s26
    %p28 = scmp.eq.s32.totalorder %s27, 0
    %s30 = sadd.s32 %s29, 1
    %s31 = scalar_select %p28, %s29, %s30
    %p34 = pneg %p28
    %p35 = scmp.eq.s32.totalorder %s19, 1
    %p36 = por %p34, %p35
    %p37 = scmp.ne.s32.totalorder %s29, %s32
    %p38 = scmp.eq.s32.totalorder %s19, 0
    %p39 = por %p37, %p38
    %p40 = scmp.ne.s32.totalorder %s29, %s32
    %p41 = scmp.eq.s32.totalorder %s24, 1
    %p42 = por %p40, %p41
    %p43 = scmp.ne.s32.totalorder %s32, %s33
    %p44 = scmp.eq.s32.totalorder %s24, 0
    %p45 = por %p43, %p44
    %p46 = scmp.ne.s32.totalorder %s32, %s33
    %p47 = scmp.eq.s32.totalorder %s25, 1
    %p48 = por %p46, %p47
    %p50 = scmp.ne.s32.totalorder %s33, %s49
    %p51 = scmp.eq.s32.totalorder %s25, 0
    %p52 = por %p50, %p51
    %s53 = ssub.s32 %s19, %s26
    %p54 = scmp.eq.s32.totalorder %s53, 0
    %s56 = sadd.s32 %s55, 1
    %s57 = scalar_select %p54, %s55, %s56
    %p60 = pneg %p54
    %p61 = scmp.eq.s32.totalorder %s19, 1
    %p62 = por %p60, %p61
    %p63 = scmp.ne.s32.totalorder %s55, %s58
    %p64 = scmp.eq.s32.totalorder %s19, 0
    %p65 = por %p63, %p64
    %p66 = scmp.ne.s32.totalorder %s55, %s58
    %p67 = scmp.eq.s32.totalorder %s24, 1
    %p68 = por %p66, %p67
    %p69 = scmp.ne.s32.totalorder %s58, %s59
    %p70 = scmp.eq.s32.totalorder %s24, 0
    %p71 = por %p69, %p70
    %p72 = scmp.ne.s32.totalorder %s58, %s59
    %p73 = scmp.eq.s32.totalorder %s25, 1
    %p74 = por %p72, %p73
    %p76 = scmp.ne.s32.totalorder %s59, %s75
    %p77 = scmp.eq.s32.totalorder %s25, 0
    %p78 = por %p76, %p77
    %s80 = sadd.s32 %s79, 1
    %p83 = scmp.eq.s32.totalorder %s19, 1
    %p84 = scmp.ne.s32.totalorder %s79, %s81
    %p85 = scmp.eq.s32.totalorder %s19, 0
    %p86 = por %p84, %p85
    %p87 = scmp.ne.s32.totalorder %s79, %s81
    %p88 = scmp.eq.s32.totalorder %s24, 1
    %p89 = por %p87, %p88
    %p90 = scmp.ne.s32.totalorder %s81, %s82
    %p91 = scmp.eq.s32.totalorder %s24, 0
    %p92 = por %p90, %p91
    %p93 = scmp.ne.s32.totalorder %s81, %s82
    %p94 = scmp.eq.s32.totalorder %s25, 1
    %p95 = por %p93, %p94
    %p97 = scmp.ne.s32.totalorder %s82, %s96
    %p98 = scmp.eq.s32.totalorder %s25, 0
    %p99 = por %p97, %p98
    %s101 = sadd.s32 %s100, 1
    %p104 = scmp.eq.s32.totalorder %s19, 1
    %p105 = scmp.ne.s32.totalorder %s100, %s102
    %p106 = scmp.eq.s32.totalorder %s19, 0
    %p107 = por %p105, %p106
    %p108 = scmp.ne.s32.totalorder %s100, %s102
    %p109 = scmp.eq.s32.totalorder %s24, 1
    %p110 = por %p108, %p109
    %p111 = scmp.ne.s32.totalorder %s102, %s103
    %p112 = scmp.eq.s32.totalorder %s24, 0
    %p113 = por %p111, %p112
    %p114 = scmp.ne.s32.totalorder %s102, %s103
    %p115 = scmp.eq.s32.totalorder %s25, 1
    %p116 = por %p114, %p115
    %p118 = scmp.ne.s32.totalorder %s103, %s117
    %p119 = scmp.eq.s32.totalorder %s25, 0
    %p120 = por %p118, %p119
    %s122 = sadd.s32 %s121, 1
    %p125 = scmp.eq.s32.totalorder %s19, 1
    %p126 = scmp.ne.s32.totalorder %s121, %s123
    %p127 = scmp.eq.s32.totalorder %s19, 0
    %p128 = por %p126, %p127
    %p129 = scmp.ne.s32.totalorder %s121, %s123
    %p130 = scmp.eq.s32.totalorder %s24, 1
    %p131 = por %p129, %p130
    %p132 = scmp.ne.s32.totalorder %s123, %s124
    %p133 = scmp.eq.s32.totalorder %s24, 0
    %p134 = por %p132, %p133
    %p135 = scmp.ne.s32.totalorder %s123, %s124
    %p136 = scmp.eq.s32.totalorder %s25, 1
    %p137 = por %p135, %p136
    %p139 = scmp.ne.s32.totalorder %s124, %s138
    %p140 = scmp.eq.s32.totalorder %s25, 0
    %p141 = por %p139, %p140
    %s143 = sadd.s32 %s142, 1
    %p146 = scmp.eq.s32.totalorder %s19, 1
    %p147 = scmp.ne.s32.totalorder %s142, %s144
    %p148 = scmp.eq.s32.totalorder %s19, 0
    %p149 = por %p147, %p148
    %p150 = scmp.ne.s32.totalorder %s142, %s144
    %p151 = scmp.eq.s32.totalorder %s24, 1
    %p152 = por %p150, %p151
    %p153 = scmp.ne.s32.totalorder %s144, %s145
    %p154 = scmp.eq.s32.totalorder %s24, 0
    %p155 = por %p153, %p154
    %p156 = scmp.ne.s32.totalorder %s144, %s145
    %p157 = scmp.eq.s32.totalorder %s25, 1
    %p158 = por %p156, %p157
    %p160 = scmp.ne.s32.totalorder %s145, %s159
    %p161 = scmp.eq.s32.totalorder %s25, 0
    %p162 = por %p160, %p161
    %s164 = sadd.s32 %s163, 1
    %p167 = scmp.eq.s32.totalorder %s19, 1
    %p168 = scmp.ne.s32.totalorder %s163, %s165
    %p169 = scmp.eq.s32.totalorder %s19, 0
    %p170 = por %p168, %p169
    %p171 = scmp.ne.s32.totalorder %s163, %s165
    %p172 = scmp.eq.s32.totalorder %s24, 1
    %p173 = por %p171, %p172
    %p174 = scmp.ne.s32.totalorder %s165, %s166
    %p175 = scmp.eq.s32.totalorder %s24, 0
    %p176 = por %p174, %p175
    %p177 = scmp.ne.s32.totalorder %s165, %s166
    %p178 = scmp.eq.s32.totalorder %s25, 1
    %p179 = por %p177, %p178
    %p181 = scmp.ne.s32.totalorder %s166, %s180
    %p182 = scmp.eq.s32.totalorder %s25, 0
    %p183 = por %p181, %p182
    %s185 = sadd.s32 %s184, 1
    %p188 = scmp.eq.s32.totalorder %s19, 1
    %p189 = scmp.ne.s32.totalorder %s184, %s186
    %p190 = scmp.eq.s32.totalorder %s19, 0
    %p191 = por %p189, %p190
    %p192 = scmp.ne.s32.totalorder %s184, %s186
    %p193 = scmp.eq.s32.totalorder %s24, 1
    %p194 = por %p192, %p193
    %p195 = scmp.ne.s32.totalorder %s186, %s187
    %p196 = scmp.eq.s32.totalorder %s24, 0
    %p197 = por %p195, %p196
    %p198 = scmp.ne.s32.totalorder %s186, %s187
    %p199 = scmp.eq.s32.totalorder %s25, 1
    %p200 = por %p198, %p199
    %p202 = scmp.ne.s32.totalorder %s187, %s201
    %p203 = scmp.eq.s32.totalorder %s25, 0
    %p204 = por %p202, %p203
    %s206 = sadd.s32 %s205, 1
    %p209 = scmp.eq.s32.totalorder %s19, 1
    %p210 = scmp.ne.s32.totalorder %s205, %s207
    %p211 = scmp.eq.s32.totalorder %s19, 0
    %p212 = por %p210, %p211
    %p213 = scmp.ne.s32.totalorder %s205, %s207
    %p214 = scmp.eq.s32.totalorder %s24, 1
    %p215 = por %p213, %p214
    %p216 = scmp.ne.s32.totalorder %s207, %s208
    %p217 = scmp.eq.s32.totalorder %s24, 0
    %p218 = por %p216, %p217
    %p219 = scmp.ne.s32.totalorder %s207, %s208
    %p220 = scmp.eq.s32.totalorder %s25, 1
    %p221 = por %p219, %p220
    %p223 = scmp.ne.s32.totalorder %s208, %s222
    %p224 = scmp.eq.s32.totalorder %s25, 0
    %p225 = por %p223, %p224
    %s227 = sadd.s32 %s226, 1
    %p230 = scmp.eq.s32.totalorder %s19, 1
    %p231 = scmp.ne.s32.totalorder %s226, %s228
    %p232 = scmp.eq.s32.totalorder %s19, 0
    %p233 = por %p231, %p232
    %p234 = scmp.ne.s32.totalorder %s226, %s228
    %p235 = scmp.eq.s32.totalorder %s24, 1
    %p236 = por %p234, %p235
    %p237 = scmp.ne.s32.totalorder %s228, %s229
    %p238 = scmp.eq.s32.totalorder %s24, 0
    %p239 = por %p237, %p238
    %p240 = scmp.ne.s32.totalorder %s228, %s229
    %p241 = scmp.eq.s32.totalorder %s25, 1
    %p242 = por %p240, %p241
    %p244 = scmp.ne.s32.totalorder %s229, %s243
    %p245 = scmp.eq.s32.totalorder %s25, 0
    %p246 = por %p244, %p245
    %s248 = sadd.s32 %s247, 1
    %p251 = scmp.eq.s32.totalorder %s19, 1
    %p252 = scmp.ne.s32.totalorder %s247, %s249
    %p253 = scmp.eq.s32.totalorder %s19, 0
    %p254 = por %p252, %p253
    %p255 = scmp.ne.s32.totalorder %s247, %s249
    %p256 = scmp.eq.s32.totalorder %s24, 1
    %p257 = por %p255, %p256
    %p258 = scmp.ne.s32.totalorder %s249, %s250
    %p259 = scmp.eq.s32.totalorder %s24, 0
    %p260 = por %p258, %p259
    %p261 = scmp.ne.s32.totalorder %s249, %s250
    %p262 = scmp.eq.s32.totalorder %s25, 1
    %p263 = por %p261, %p262
    %p265 = scmp.ne.s32.totalorder %s250, %s264
    %p266 = scmp.eq.s32.totalorder %s25, 0
    %p267 = por %p265, %p266
    %s268 = ssub.s32 %s19, %s26
    %p269 = scmp.eq.s32.totalorder %s268, 0
    %s271 = sadd.s32 %s270, 1
    %s272 = scalar_select %p269, %s270, %s271
    %p275 = pneg %p269
    %p276 = scmp.eq.s32.totalorder %s19, 1
    %p277 = por %p275, %p276
    %p278 = scmp.ne.s32.totalorder %s270, %s273
    %p279 = scmp.eq.s32.totalorder %s19, 0
    %p280 = por %p278, %p279
    %p281 = scmp.ne.s32.totalorder %s270, %s273
    %p282 = scmp.eq.s32.totalorder %s24, 1
    %p283 = por %p281, %p282
    %p284 = scmp.ne.s32.totalorder %s273, %s274
    %p285 = scmp.eq.s32.totalorder %s24, 0
    %p286 = por %p284, %p285
    %p287 = scmp.ne.s32.totalorder %s273, %s274
    %p288 = scmp.eq.s32.totalorder %s25, 1
    %p289 = por %p287, %p288
    %p291 = scmp.ne.s32.totalorder %s274, %s290
    %p292 = scmp.eq.s32.totalorder %s25, 0
    %p293 = por %p291, %p292
    %p294 = scmp.le.s32.totalorder 1, %s19
    %p295 = scmp.lt.s32.totalorder %s19, 3
    %p296 = pnand %p294, %p295
    %p297 = pneg %p296
    // Predicated region
    $region9: #{attention_block_forward.1} parent=5 // pred_check
      _
    $region10: #{attention_block_forward.1} parent=5 // pred_check_branch
      %299 = sbr.rel (%p296) target = $region12
    $region11: #{attention_block_forward.1} parent=5 // pred_region
      %s300 = ssub.s32 %s19, 1
      // Predicated region
      $region13: #{attention_block_forward.1} parent=11 // pred_check
        %p301 = pneg %p92
      $region14: #{attention_block_forward.1} parent=11 // pred_check_branch
        %303 = sbr.rel (%p301) target = $region16
      $region15: #{attention_block_forward.1} parent=11 // pred_region
        _
      $region16: #{attention_block_forward.1} parent=11 // pred_fallthru
        _
      // Predicated region
      $region17: #{attention_block_forward.1} parent=11 // pred_check
        %p304 = pneg %p113
      $region18: #{attention_block_forward.1} parent=11 // pred_check_branch
        %306 = sbr.rel (%p304) target = $region20
      $region19: #{attention_block_forward.1} parent=11 // pred_region
        _
      $region20: #{attention_block_forward.1} parent=11 // pred_fallthru
        _
      // Predicated region
      $region21: #{attention_block_forward.1} parent=11 // pred_check
        %p307 = pneg %p134
      $region22: #{attention_block_forward.1} parent=11 // pred_check_branch
        %309 = sbr.rel (%p307) target = $region24
      $region23: #{attention_block_forward.1} parent=11 // pred_region
        _
      $region24: #{attention_block_forward.1} parent=11 // pred_fallthru
        _
      // Predicated region
      $region25: #{attention_block_forward.1} parent=11 // pred_check
        %p310 = pneg %p155
      $region26: #{attention_block_forward.1} parent=11 // pred_check_branch
        %312 = sbr.rel (%p310) target = $region28
      $region27: #{attention_block_forward.1} parent=11 // pred_region
        _
      $region28: #{attention_block_forward.1} parent=11 // pred_fallthru
        _
      // Predicated region
      $region29: #{attention_block_forward.1} parent=11 // pred_check
        %p313 = pneg %p176
      $region30: #{attention_block_forward.1} parent=11 // pred_check_branch
        %315 = sbr.rel (%p313) target = $region32
      $region31: #{attention_block_forward.1} parent=11 // pred_region
        _
      $region32: #{attention_block_forward.1} parent=11 // pred_fallthru
        _
      // Predicated region
      $region33: #{attention_block_forward.1} parent=11 // pred_check
        %p316 = pneg %p197
      $region34: #{attention_block_forward.1} parent=11 // pred_check_branch
        %318 = sbr.rel (%p316) target = $region36
      $region35: #{attention_block_forward.1} parent=11 // pred_region
        _
      $region36: #{attention_block_forward.1} parent=11 // pred_fallthru
        _
      // Predicated region
      $region37: #{attention_block_forward.1} parent=11 // pred_check
        %p319 = pneg %p218
      $region38: #{attention_block_forward.1} parent=11 // pred_check_branch
        %321 = sbr.rel (%p319) target = $region40
      $region39: #{attention_block_forward.1} parent=11 // pred_region
        _
      $region40: #{attention_block_forward.1} parent=11 // pred_fallthru
        _
      // Predicated region
      $region41: #{attention_block_forward.1} parent=11 // pred_check
        %p322 = pneg %p239
      $region42: #{attention_block_forward.1} parent=11 // pred_check_branch
        %324 = sbr.rel (%p322) target = $region44
      $region43: #{attention_block_forward.1} parent=11 // pred_region
        _
      $region44: #{attention_block_forward.1} parent=11 // pred_fallthru
        _
      // Predicated region
      $region45: #{attention_block_forward.1} parent=11 // pred_check
        %p325 = pneg %p260
      $region46: #{attention_block_forward.1} parent=11 // pred_check_branch
        %327 = sbr.rel (%p325) target = $region48
      $region47: #{attention_block_forward.1} parent=11 // pred_region
        _
      $region48: #{attention_block_forward.1} parent=11 // pred_fallthru
        _
    $region12: #{attention_block_forward.1} parent=5 // pred_fallthru
      _
    %p328 = scmp.lt.s32.totalorder %s19, 2
    // Predicated region
    $region49: #{attention_block_forward.1} parent=5 // pred_check
      %p329 = pneg %p328
    $region50: #{attention_block_forward.1} parent=5 // pred_check_branch
      %331 = sbr.rel (%p329) target = $region52
    $region51: #{attention_block_forward.1} parent=5 // pred_region
      // Predicated region
      $region53: #{attention_block_forward.1} parent=51 // pred_check
        %p332 = pneg %p39
      $region54: #{attention_block_forward.1} parent=51 // pred_check_branch
        %334 = sbr.rel (%p332) target = $region56
      $region55: #{attention_block_forward.1} parent=51 // pred_region
        %p335 = scmp.lt.s32.totalorder %s19, 1
        %s336 = scalar_select %p335, %s19, 1
        %s337 = smul.addr %s336, 2
        %s338 = smul.addr %s337, 4
        %s339 = scalar_lea.vmem %s0, %s338
      $region56: #{attention_block_forward.1} parent=51 // pred_fallthru
        _
      // Predicated region
      $region57: #{attention_block_forward.1} parent=51 // pred_check
        %p340 = pneg %p65
      $region58: #{attention_block_forward.1} parent=51 // pred_check_branch
        %342 = sbr.rel (%p340) target = $region60
      $region59: #{attention_block_forward.1} parent=51 // pred_region
        %p343 = scmp.lt.s32.totalorder %s19, 1
        %s344 = scalar_select %p343, %s19, 1
        %s345 = smul.addr %s344, 8
        %s346 = scalar_lea.vmem %s1, %s345
      $region60: #{attention_block_forward.1} parent=51 // pred_fallthru
        _
    $region52: #{attention_block_forward.1} parent=5 // pred_fallthru
      _
    %p347 = scmp.le.s32.totalorder 1, %s19
    %p348 = scmp.lt.s32.totalorder %s19, 3
    %p349 = pnand %p347, %p348
    %p350 = pneg %p349
    // Predicated region
    $region61: #{attention_block_forward.1} parent=5 // pred_check
      _
    $region62: #{attention_block_forward.1} parent=5 // pred_check_branch
      %352 = sbr.rel (%p349) target = $region64
    $region63: #{attention_block_forward.1} parent=5 // pred_region
      %s353 = ssub.s32 %s19, 1
      %p354 = scmp.lt.s32.totalorder %s24, 1
      %s355 = scalar_select %p354, %s24, 1
      %s356 = smul.addr %s355, 2
      %s357 = smul.addr %s356, 4
      %s358 = scalar_lea.vmem %s0, %s357
      %p359 = pneg %p45
      %p360 = pneg %p42
      %p361 = scmp.lt.s32.totalorder %s24, 1
      %s362 = scalar_select %p361, %s24, 1
      %s363 = smul.addr %s362, 8
      %s364 = scalar_lea.vmem %s1, %s363
      %p365 = pneg %p71
      %p366 = pneg %p68
      %p367 = pneg %p92
      %p368 = pneg %p89
      %p369 = pneg %p113
      %p370 = pneg %p110
      %p371 = pneg %p134
      %p372 = pneg %p131
      %p373 = pneg %p155
      %p374 = pneg %p152
      %p375 = pneg %p176
      %p376 = pneg %p173
      %p377 = pneg %p197
      %p378 = pneg %p194
      %p379 = pneg %p218
      %p380 = pneg %p215
      %p381 = pneg %p239
      %p382 = pneg %p236
      %p383 = pneg %p260
      %p384 = pneg %p257
      %p385 = pneg %p286
      %p386 = pneg %p283
      %p387 = scmp.lt.s32.totalorder %s24, 1
      %s388 = scalar_select %p387, %s24, 1
      %s389 = smul.addr %s388, 4
      %s390 = smul.addr %s389, 8
      %s391 = scalar_lea.vmem %s11, %s390
      %p392 = scmp.lt.s32.totalorder %s24, 1
      %s393 = scalar_select %p392, %s24, 1
      %s394 = smul.addr %s393, 2
      %s395 = smul.addr %s394, 4
      %s396 = scalar_lea.vmem %s0, %s395
      %p397 = scmp.lt.s32.totalorder %s24, 1
      %s398 = scalar_select %p397, %s24, 1
      %s399 = smul.addr %s398, 8
      %s400 = scalar_lea.vmem %s1, %s399
      %p401 = scmp.lt.s32.totalorder %s24, 1
      %s402 = scalar_select %p401, %s24, 1
      %s403 = smul.addr %s402, 4
      %s404 = smul.addr %s403, 8
      %s405 = scalar_lea.vmem %s11, %s404
      %v406 = vld [vmem:[%s396] sm:$0xff]
      %v407 = vld [vmem:[%s400] sm:$0xff]
      %v408 = vld [vmem:[%s2] sm:$0xff]
      %v409 = vld [vmem:[%s2 + $0x8] sm:$0xff]
      %v410 = vld [vmem:[%s2 + $0x10] sm:$0xff]
      %v411 = vld [vmem:[%s2 + $0x18] sm:$0xff]
      %v412 = vld [vmem:[%s2 + $0x20] sm:$0xff]
      %v413 = vld [vmem:[%s2 + $0x28] sm:$0xff]
      %v414 = vld [vmem:[%s2 + $0x30] sm:$0xff]
      %v415 = vld [vmem:[%s2 + $0x38] sm:$0xff]
      %v416 = vld [vmem:[%s2 + $0x40] sm:$0xff]
      %v417 = vld [vmem:[%s2 + $0x48] sm:$0xff]
      %v418 = vld [vmem:[%s2 + $0x50] sm:$0xff]
      %v419 = vld [vmem:[%s2 + $0x58] sm:$0xff]
      %v420 = vld [vmem:[%s2 + $0x60] sm:$0xff]
      %v421 = vld [vmem:[%s2 + $0x68] sm:$0xff]
      %v422 = vld [vmem:[%s2 + $0x70] sm:$0xff]
      %v423 = vld [vmem:[%s2 + $0x78] sm:$0xff]
      %vm424 = vcmask 523264
      %v426 = vsel %vm424, %v407, 0
      %428 = vmatpush.msra.mxu0 0.0
      %429 = vmatpush.msra.mxu0 0.0
      %430 = vmatpush.msra.mxu0 0.0
      %431 = vmatpush.msra.mxu0 0.0
      %432 = vmatpush.msra.mxu0 0.0
      %433 = vmatpush.msra.mxu0 0.0
      %434 = vmatpush.msra.mxu0 0.0
      %435 = vmatpush.msra.mxu0 0.0
      %436 = vmatpush.msra.mxu0 %v422
      %437 = vmatpush.msra.mxu0 %v420
      %438 = vmatpush.msra.mxu0 %v418
      %439 = vmatpush.msra.mxu0 %v416
      %440 = vmatpush.msra.mxu0 %v414
      %441 = vmatpush.msra.mxu0 %v412
      %442 = vmatpush.msra.mxu0 %v410
      %443 = vmatpush.msra.mxu0 %v408
      %444 = vmatmul.f32.gmra.mxu0 %v426
      %v445 = vpop.f32.mrf.mxu0
      %v446 = vadd.f32 0.0, %v445
      %447 = vdwg.mxu0
      %448 = vmatpush.msra.mxu0 0.0
      %449 = vmatpush.msra.mxu0 0.0
      %450 = vmatpush.msra.mxu0 0.0
      %451 = vmatpush.msra.mxu0 0.0
      %452 = vmatpush.msra.mxu0 0.0
      %453 = vmatpush.msra.mxu0 0.0
      %454 = vmatpush.msra.mxu0 0.0
      %455 = vmatpush.msra.mxu0 0.0
      %456 = vmatpush.msra.mxu0 %v423
      %457 = vmatpush.msra.mxu0 %v421
      %458 = vmatpush.msra.mxu0 %v419
      %459 = vmatpush.msra.mxu0 %v417
      %460 = vmatpush.msra.mxu0 %v415
      %461 = vmatpush.msra.mxu0 %v413
      %462 = vmatpush.msra.mxu0 %v411
      %463 = vmatpush.msra.mxu0 %v409
      %464 = vmatmul.f32.gmra.mxu0 %v426
      %v465 = vpop.f32.mrf.mxu0
      %v466 = vadd.f32 0.0, %v465
      %467 = vdwg.mxu0
      %v468 = vld [vmem:[%s5] sm:$0xff]
      %v469 = vld [vmem:[%s5 + $0x8] sm:$0xff]
      %v470 = vld [vmem:[%s6] sm:$0xff]
      %v471 = vld [vmem:[%s6 + $0x8] sm:$0xff]
      %473 = vset.pattern.permute.xlu0 0
      %474 = vperm.xlu0 %473, %v470
      %v475 = vpop.permute.xlu0 %474
      %478 = vset.pattern.permute.xlu0 0
      %479 = vperm.xlu0 %478, %v471
      %v480 = vpop.permute.xlu0 %479
      %vm482 = vcmask 64512
      %v484 = vsel %vm482, %v468, 0
      %v487 = vsel %vm482, %v469, 0
      %489 = vmatpush.msra.mxu0 0.0
      %490 = vmatpush.msra.mxu0 0.0
      %491 = vmatpush.msra.mxu0 0.0
      %492 = vmatpush.msra.mxu0 0.0
      %493 = vmatpush.msra.mxu0 0.0
      %494 = vmatpush.msra.mxu0 0.0
      %495 = vmatpush.msra.mxu0 0.0
      %496 = vmatpush.msra.mxu0 0.0
      %497 = vmatpush.msra.mxu0 0.0
      %498 = vmatpush.msra.mxu0 0.0
      %499 = vmatpush.msra.mxu0 0.0
      %500 = vmatpush.msra.mxu0 0.0
      %501 = vmatpush.msra.mxu0 0.0
      %502 = vmatpush.msra.mxu0 0.0
      %503 = vmatpush.msra.mxu0 0.0
      %504 = vmatpush.msra.mxu0 %v446
      %505 = vmatmul.f32.gmra.mxu0 %v484
      %v506 = vpop.f32.mrf.mxu0
      %v507 = vadd.f32 %v475, %v506
      %508 = vmatmul.f32.gmra.mxu0 %v487
      %v509 = vpop.f32.mrf.mxu0
      %v510 = vadd.f32 %v480, %v509
      %511 = vdwg.mxu0
      %512 = vmatpush.msra.mxu0 0.0
      %513 = vmatpush.msra.mxu0 0.0
      %514 = vmatpush.msra.mxu0 0.0
      %515 = vmatpush.msra.mxu0 0.0
      %516 = vmatpush.msra.mxu0 0.0
      %517 = vmatpush.msra.mxu0 0.0
      %518 = vmatpush.msra.mxu0 0.0
      %519 = vmatpush.msra.mxu0 0.0
      %520 = vmatpush.msra.mxu0 0.0
      %521 = vmatpush.msra.mxu0 0.0
      %522 = vmatpush.msra.mxu0 0.0
      %523 = vmatpush.msra.mxu0 0.0
      %524 = vmatpush.msra.mxu0 0.0
      %525 = vmatpush.msra.mxu0 0.0
      %526 = vmatpush.msra.mxu0 0.0
      %527 = vmatpush.msra.mxu0 %v466
      %528 = vmatmul.f32.gmra.mxu0 %v484
      %v529 = vpop.f32.mrf.mxu0
      %v530 = vadd.f32 %v475, %v529
      %531 = vmatmul.f32.gmra.mxu0 %v487
      %v532 = vpop.f32.mrf.mxu0
      %v533 = vadd.f32 %v480, %v532
      %534 = vdwg.mxu0
      %v535 = vmax.f32 %v507, 0.0
      %v536 = vmax.f32 %v530, 0.0
      %v537 = vmax.f32 %v510, 0.0
      %v538 = vmax.f32 %v533, 0.0
      %v539 = vld [vmem:[%s7] sm:$0xff]
      %v540 = vld [vmem:[%s7 + $0x8] sm:$0xff]
      %v541 = vld [vmem:[%s8] sm:$0xff]
      %v542 = vld [vmem:[%s8 + $0x8] sm:$0xff]
      %544 = vset.pattern.permute.xlu0 0
      %545 = vperm.xlu0 %544, %v541
      %v546 = vpop.permute.xlu0 %545
      %549 = vset.pattern.permute.xlu0 0
      %550 = vperm.xlu0 %549, %v542
      %v551 = vpop.permute.xlu0 %550
      %vm553 = vcmask 130048
      %v555 = vsel %vm553, %v539, 0
      %v558 = vsel %vm553, %v540, 0
      %560 = vmatpush.msra.mxu0 0.0
      %561 = vmatpush.msra.mxu0 0.0
      %562 = vmatpush.msra.mxu0 0.0
      %563 = vmatpush.msra.mxu0 0.0
      %564 = vmatpush.msra.mxu0 0.0
      %565 = vmatpush.msra.mxu0 0.0
      %566 = vmatpush.msra.mxu0 0.0
      %567 = vmatpush.msra.mxu0 0.0
      %568 = vmatpush.msra.mxu0 0.0
      %569 = vmatpush.msra.mxu0 0.0
      %570 = vmatpush.msra.mxu0 0.0
      %571 = vmatpush.msra.mxu0 0.0
      %572 = vmatpush.msra.mxu0 0.0
      %573 = vmatpush.msra.mxu0 0.0
      %574 = vmatpush.msra.mxu0 %v537
      %575 = vmatpush.msra.mxu0 %v535
      %576 = vmatmul.f32.gmra.mxu0 %v555
      %v577 = vpop.f32.mrf.mxu0
      %v578 = vadd.f32 %v546, %v577
      %579 = vmatmul.f32.gmra.mxu0 %v558
      %v580 = vpop.f32.mrf.mxu0
      %v581 = vadd.f32 %v551, %v580
      %582 = vdwg.mxu0
      %583 = vmatpush.msra.mxu0 0.0
      %584 = vmatpush.msra.mxu0 0.0
      %585 = vmatpush.msra.mxu0 0.0
      %586 = vmatpush.msra.mxu0 0.0
      %587 = vmatpush.msra.mxu0 0.0
      %588 = vmatpush.msra.mxu0 0.0
      %589 = vmatpush.msra.mxu0 0.0
      %590 = vmatpush.msra.mxu0 0.0
      %591 = vmatpush.msra.mxu0 0.0
      %592 = vmatpush.msra.mxu0 0.0
      %593 = vmatpush.msra.mxu0 0.0
      %594 = vmatpush.msra.mxu0 0.0
      %595 = vmatpush.msra.mxu0 0.0
      %596 = vmatpush.msra.mxu0 0.0
      %597 = vmatpush.msra.mxu0 %v538
      %598 = vmatpush.msra.mxu0 %v536
      %599 = vmatmul.f32.gmra.mxu0 %v555
      %v600 = vpop.f32.mrf.mxu0
      %v601 = vadd.f32 %v546, %v600
      %602 = vmatmul.f32.gmra.mxu0 %v558
      %v603 = vpop.f32.mrf.mxu0
      %v604 = vadd.f32 %v551, %v603
      %605 = vdwg.mxu0
      %v606 = vmax.f32 %v578, 0.0
      %v607 = vmax.f32 %v601, 0.0
      %v608 = vmax.f32 %v581, 0.0
      %v609 = vmax.f32 %v604, 0.0
      %v610 = vld [vmem:[%s3] sm:$0xff]
      %v611 = vld [vmem:[%s3 + $0x8] sm:$0xff]
      %v612 = vld [vmem:[%s4] sm:$0xff]
      %v613 = vld [vmem:[%s4 + $0x8] sm:$0xff]
      %615 = vset.pattern.permute.xlu0 0
      %616 = vperm.xlu0 %615, %v612
      %v617 = vpop.permute.xlu0 %616
      %620 = vset.pattern.permute.xlu0 0
      %621 = vperm.xlu0 %620, %v613
      %v622 = vpop.permute.xlu0 %621
      %625 = vst [vmem:[#allocation1] ss:$2 sm:$0xff] %v406
      %v626 = vld.sshfl [vmem:[#allocation1] sm:$0xff pattern:$0x75316420]
      %v627 = vld.sshfl [vmem:[#allocation1 + $0x8] sm:$0xff pattern:$0x75316420]
      %vm628 = vcmask 31744
      %v630 = vsel %vm628, %v610, 0
      %v633 = vsel %vm628, %v611, 0
      %vm635 = vcmask 1043456
      %v636 = vsel %vm635, %v626, 0
      %v638 = vsel %vm635, %v627, 0
      %640 = vmatpush.msra.mxu0 0.0
      %641 = vmatpush.msra.mxu0 0.0
      %642 = vmatpush.msra.mxu0 0.0
      %643 = vmatpush.msra.mxu0 0.0
      %644 = vmatpush.msra.mxu0 0.0
      %645 = vmatpush.msra.mxu0 0.0
      %646 = vmatpush.msra.mxu0 0.0
      %647 = vmatpush.msra.mxu0 0.0
      %648 = vmatpush.msra.mxu0 0.0
      %649 = vmatpush.msra.mxu0 0.0
      %650 = vmatpush.msra.mxu0 0.0
      %651 = vmatpush.msra.mxu0 0.0
      %652 = vmatpush.msra.mxu0 0.0
      %653 = vmatpush.msra.mxu0 0.0
      %654 = vmatpush.msra.mxu0 0.0
      %655 = vmatpush.msra.mxu0 %v636
      %656 = vmatmul.f32.gmra.mxu0 %v630
      %v657 = vpop.f32.mrf.mxu0
      %v658 = vadd.f32 %v617, %v657
      %659 = vmatmul.f32.gmra.mxu0 %v633
      %v660 = vpop.f32.mrf.mxu0
      %v661 = vadd.f32 %v622, %v660
      %662 = vdwg.mxu0
      %663 = vmatpush.msra.mxu0 0.0
      %664 = vmatpush.msra.mxu0 0.0
      %665 = vmatpush.msra.mxu0 0.0
      %666 = vmatpush.msra.mxu0 0.0
      %667 = vmatpush.msra.mxu0 0.0
      %668 = vmatpush.msra.mxu0 0.0
      %669 = vmatpush.msra.mxu0 0.0
      %670 = vmatpush.msra.mxu0 0.0
      %671 = vmatpush.msra.mxu0 0.0
      %672 = vmatpush.msra.mxu0 0.0
      %673 = vmatpush.msra.mxu0 0.0
      %674 = vmatpush.msra.mxu0 0.0
      %675 = vmatpush.msra.mxu0 0.0
      %676 = vmatpush.msra.mxu0 0.0
      %677 = vmatpush.msra.mxu0 0.0
      %678 = vmatpush.msra.mxu0 %v638
      %679 = vmatmul.f32.gmra.mxu0 %v630
      %v680 = vpop.f32.mrf.mxu0
      %v681 = vadd.f32 %v617, %v680
      %682 = vmatmul.f32.gmra.mxu0 %v633
      %v683 = vpop.f32.mrf.mxu0
      %v684 = vadd.f32 %v622, %v683
      %685 = vdwg.mxu0
      %v686 = vmax.f32 %v658, 0.0
      %v687 = vmax.f32 %v681, 0.0
      %v688 = vmax.f32 %v661, 0.0
      %v689 = vmax.f32 %v684, 0.0
      %v690 = vadd.f32 %v686, %v606
      %v691 = vadd.f32 %v687, %v607
      %v692 = vadd.f32 %v688, %v608
      %v693 = vadd.f32 %v689, %v609
      %v694 = vld [vmem:[%s9] sm:$0xff]
      %v695 = vld [vmem:[%s9 + $0x8] sm:$0xff]
      %697 = vset.pattern.permute.xlu0 0
      %698 = vperm.xlu0 %697, %v694
      %v699 = vpop.permute.xlu0 %698
      %702 = vset.pattern.permute.xlu0 0
      %703 = vperm.xlu0 %702, %v695
      %v704 = vpop.permute.xlu0 %703
      %v706 = vmul.f32 %v690, %v699
      %v707 = vmul.f32 %v691, %v699
      %v708 = vmul.f32 %v692, %v704
      %v709 = vmul.f32 %v693, %v704
      %v710 = vadd.f32 %v706, %v708
      %v711 = vrot.slane %v710, 4
      %v712 = vadd.f32 %v710, %v711
      %v713 = vrot.slane %v712, 2
      %v714 = vadd.f32 %v712, %v713
      %v715 = vrot.slane %v714, 1
      %v716 = vadd.f32 %v714, %v715
      %v717 = vadd.f32 %v707, %v709
      %v718 = vrot.slane %v717, 4
      %v719 = vadd.f32 %v717, %v718
      %v720 = vrot.slane %v719, 2
      %v721 = vadd.f32 %v719, %v720
      %v722 = vrot.slane %v721, 1
      %v723 = vadd.f32 %v721, %v722
      %v724 = vld [vmem:[#allocation2] sm:$0x1]
      %726 = vset.pattern.permute.xlu0 0
      %727 = vperm.xlu0 %726, %v724
      %v728 = vpop.permute.xlu0 %727
      %v730 = vperm.slane %v728, 0
      %v731 = vadd.f32 %v716, %v730
      %v732 = vadd.f32 %v723, %v730
      %v733 = vsub.f32 0.0, %v731
      %v734 = vsub.f32 0.0, %v732
      %v735 = vmul.f32 %v733, 1.442695
      %v736 = vpow.pop %v735
      %v737 = vmul.f32 %v734, 1.442695
      %v738 = vpow.pop %v737
      %v739 = vadd.f32 %v736, 1.0
      %v740 = vadd.f32 %v738, 1.0
      %v741 = vrcp.pop %v739
      %v742 = vrcp.pop %v740
      %v743 = vmul.f32 %v690, %v741
      %v744 = vmul.f32 %v691, %v742
      %v745 = vmul.f32 %v692, %v741
      %v746 = vmul.f32 %v693, %v742
      %747 = vst [vmem:[%s405] sm:$0xff] %v743
      %748 = vst [vmem:[%s405 + $0x8] sm:$0xff] %v744
      %749 = vst [vmem:[%s405 + $0x10] sm:$0xff] %v745
      %750 = vst [vmem:[%s405 + $0x18] sm:$0xff] %v746
      %p751 = scmp.lt.s32.totalorder %s24, 1
      %s752 = scalar_select %p751, %s24, 1
      %s753 = smul.addr %s752, 4
      %s754 = smul.addr %s753, 8
      %s755 = scalar_lea.vmem %s11, %s754
      // Predicated region
      $region65: #{attention_block_forward.1} parent=63 // pred_check
        %p756 = pneg %p283
      $region66: #{attention_block_forward.1} parent=63 // pred_check_branch
        %758 = sbr.rel (%p756) target = $region68
      $region67: #{attention_block_forward.1} parent=63 // pred_region
        _
      $region68: #{attention_block_forward.1} parent=63 // pred_fallthru
        _
    $region64: #{attention_block_forward.1} parent=5 // pred_fallthru
      _
    %p759 = scmp.le.s32.totalorder 2, %s19
    // Predicated region
    $region69: #{attention_block_forward.1} parent=5 // pred_check
      %p760 = pneg %p759
    $region70: #{attention_block_forward.1} parent=5 // pred_check_branch
      %762 = sbr.rel (%p760) target = $region72
    $region71: #{attention_block_forward.1} parent=5 // pred_region
      %s763 = ssub.s32 %s19, 2
      // Predicated region
      $region73: #{attention_block_forward.1} parent=71 // pred_check
        %p764 = pneg %p289
      $region74: #{attention_block_forward.1} parent=71 // pred_check_branch
        %766 = sbr.rel (%p764) target = $region76
      $region75: #{attention_block_forward.1} parent=71 // pred_region
        %p767 = scmp.lt.s32.totalorder %s25, 1
        %s768 = scalar_select %p767, %s25, 1
        %s769 = smul.addr %s768, 4
        %s770 = smul.addr %s769, 8
        %s771 = scalar_lea.vmem %s11, %s770
      $region76: #{attention_block_forward.1} parent=71 // pred_fallthru
        _
    $region72: #{attention_block_forward.1} parent=5 // pred_fallthru
      _
  $region6: #{attention_block_forward.1} parent=0 // loop_footer
    %s23 = sadd.s32 1, %s19
  $region7: #{attention_block_forward.1} parent=0 // loop_footer_branch
    %18 = sbr.rel target = $region3
  $region8: #{attention_block_forward.1} parent=0 // loop_exit
    _

</llo_original>
